<compile_context>
chip_gen: v7x
topology: tpu7x:2x2x1
jax: 0.10.0
libtpu: 0.0.40
codegen_flags: <defaults>
</compile_context>

<pallas_src>
import functools

import jax
import jax.numpy as jnp
from jax.experimental import pallas as pl
from jax.experimental.pallas import tpu as pltpu

LAYER_SIZES = [3, 3, 3, 3, 3, 1]
USE_SHORTCUT = True
N_LAYERS = len(LAYER_SIZES) - 1
IN0 = LAYER_SIZES[0]
OUT_LAST = LAYER_SIZES[-1]

LANE = 128            # vreg lane width; batch maps onto lanes (and sublanes)
ROWS_PER_TILE = 32    # 32 sublane-rows x 128 lanes = 4096 samples per grid step

# Flat SMEM offsets for the packed weight / bias scalars.
_W_OFFSETS, _B_OFFSETS = [], []
_wo = _bo = 0
for _l in range(N_LAYERS):
    _W_OFFSETS.append(_wo)
    _B_OFFSETS.append(_bo)
    _wo += LAYER_SIZES[_l] * LAYER_SIZES[_l + 1]
    _bo += LAYER_SIZES[_l + 1]
N_W, N_B = _wo, _bo   # 39 weights, 13 biases


def _gelu_tanh(x):
    # GELU (tanh approximation) — matches the tutorial's custom GELU module.
    c0 = 0.7978845608028654  # sqrt(2/pi)
    return 0.5 * x * (1.0 + jnp.tanh(c0 * (x + 0.044715 * x * x * x)))


def _dnn_kernel(shortcut_flags, w_ref, b_ref, x_ref, o_ref):
    """Batch-in-lanes forward.

    w_ref: (N_W,) f32 SMEM scalars; b_ref: (N_B,) f32 SMEM scalars.
    x_ref: (IN0, r_tile, LANE) VMEM (feature-major, batch folded into last 2 dims).
    o_ref: (OUT_LAST, r_tile, LANE) VMEM (lane-dense output tile).
    """
    # One dense (r_tile, LANE) slab per input feature — plain VMEM loads,
    # no cross-lane relayouts anywhere in the kernel.
    act = [x_ref[j].astype(jnp.float32) for j in range(IN0)]

    for l in range(N_LAYERS):
        in_f, out_f = LAYER_SIZES[l], LAYER_SIZES[l + 1]
        wb, bb = _W_OFFSETS[l], _B_OFFSETS[l]
        new_act = []
        for o in range(out_f):
            # y_o = b_o + sum_j W[o, j] * act_j  — scalar-splat FMAs on the VPU.
            y = b_ref[bb + o] + w_ref[wb + o * in_f] * act[0]
            for j in range(1, in_f):
                y = y + w_ref[wb + o * in_f + j] * act[j]
            y = _gelu_tanh(y)                    # tanh lands on the EUP slot
            if shortcut_flags[l]:                # static (trace-time) choice
                y = act[o] + y
            new_act.append(y)
        act = new_act

    o_ref[...] = jnp.stack(act, axis=0).astype(o_ref.dtype)


def pack_params(weights, biases):
    """One-time packing of all layer params into two tiny flat f32 arrays.

    weights[l]: (out_l, in_l) PyTorch layout; biases[l]: (out_l,).
    Kernel reads W_l[o, j] at w_flat[_W_OFFSETS[l] + o * in_l + j].
    """
    w_flat = jnp.concatenate([w.astype(jnp.float32).reshape(-1) for w in weights])
    b_flat = jnp.concatenate([b.astype(jnp.float32).reshape(-1) for b in biases])
    assert w_flat.shape == (N_W,) and b_flat.shape == (N_B,)
    return w_flat, b_flat


def make_forward(use_shortcut=USE_SHORTCUT):
    # Shortcut applies iff activation shapes match (in_features == out_features).
    shortcut_flags = tuple(
        use_shortcut and (LAYER_SIZES[l] == LAYER_SIZES[l + 1])
        for l in range(N_LAYERS))
    kernel = functools.partial(_dnn_kernel, shortcut_flags)

    @jax.jit
    def forward(x, w_flat, b_flat):
        B, f_in = x.shape
        assert f_in == IN0

        # Fold batch into (rows, LANE); small batches use one full-array tile,
        # large batches use ROWS_PER_TILE-row tiles on a parallel grid axis.
        rows = -(-B // LANE)
        if rows <= ROWS_PER_TILE:
            r_tile = rows
        else:
            r_tile = ROWS_PER_TILE
            rows = -(-rows // r_tile) * r_tile
        b_pad = rows * LANE
        n_tiles = rows // r_tile

        # Batch-in-lanes input layout: (IN0, rows, LANE).  Padded samples carry
        # bias-only garbage through the net and are sliced off at the end.
        xp = jnp.zeros((b_pad, IN0), jnp.float32).at[:B, :].set(x.astype(jnp.float32))
        x_t = xp.T.reshape(IN0, rows, LANE)

        out3 = pl.pallas_call(
            kernel,
            out_shape=jax.ShapeDtypeStruct((OUT_LAST, rows, LANE), jnp.float32),
            grid=(n_tiles,),
            in_specs=[
                pl.BlockSpec(memory_space=pltpu.MemorySpace.SMEM),  # weight scalars
                pl.BlockSpec(memory_space=pltpu.MemorySpace.SMEM),  # bias scalars
                pl.BlockSpec((IN0, r_tile, LANE), lambda i: (0, i, 0)),
            ],
            out_specs=pl.BlockSpec((OUT_LAST, r_tile, LANE), lambda i: (0, i, 0)),
            compiler_params=pltpu.CompilerParams(
                dimension_semantics=("parallel",)),   # megacore sharding on v7x
        )(w_flat, b_flat, x_t)

        return out3.reshape(OUT_LAST, b_pad)[:, :B].T   # (B, OUT_LAST)

    return forward


def _reference_forward(x, weights, biases, use_shortcut=USE_SHORTCUT):
    """Plain-JAX reference mirroring the PyTorch forward."""
    x = x.astype(jnp.float32)
    for l in range(N_LAYERS):
        y = x @ weights[l].T.astype(jnp.float32) + biases[l].astype(jnp.float32)
        y = _gelu_tanh(y)
        if use_shortcut and x.shape == y.shape:
            x = x + y
        else:
            x = y
    return x


if __name__ == "__main__":
    key = jax.random.PRNGKey(0)
    keys = jax.random.split(key, 2 + 2 * N_LAYERS)

    # Deterministic PyTorch-style init: U(-1/sqrt(in_f), 1/sqrt(in_f)).
    weights, biases = [], []
    for l in range(N_LAYERS):
        in_f, out_f = LAYER_SIZES[l], LAYER_SIZES[l + 1]
        bound = 1.0 / float(in_f) ** 0.5
        w = jax.random.uniform(keys[2 + 2 * l], (out_f, in_f),
                               minval=-bound, maxval=bound, dtype=jnp.float32)
        b = jax.random.uniform(keys[3 + 2 * l], (out_f,),
                               minval=-bound, maxval=bound, dtype=jnp.float32)
        weights.append(w)
        biases.append(b)

    # Hoisted out of the per-call path: pack all params once at init.
    w_flat, b_flat = jax.block_until_ready(pack_params(weights, biases))

    forward = make_forward(use_shortcut=USE_SHORTCUT)

    # Small-batch case (B=2, single tile) and a batched multi-tile case.
    for idx, B in enumerate((2, 5000)):
        x = jax.random.normal(keys[idx], (B, IN0), dtype=jnp.float32)
        out = jax.block_until_ready(forward(x, w_flat, b_flat))
        ref = _reference_forward(x, weights, biases, use_shortcut=USE_SHORTCUT)
        assert out.shape == (B, OUT_LAST)
        assert jnp.allclose(out, ref, atol=1e-5, rtol=1e-5)

    print("KERNEL_OK")
</pallas_src>

<mosaic_0001>
module attributes {stable_mosaic.version = 11 : i64} {
  func.func @_dnn_kernel(%arg0: i32, %arg1: memref<39xf32, #tpu.memory_space<smem>>, %arg2: memref<13xf32, #tpu.memory_space<smem>>, %arg3: memref<3x1x128xf32, #tpu.memory_space<vmem>>, %arg4: memref<1x1x128xf32, #tpu.memory_space<vmem>>) attributes {dimension_semantics = [#tpu.dimension_semantics<parallel>], iteration_bounds = array<i64: 1>, scalar_prefetch = 0 : i64, scratch_operands = 0 : i64, tpu.core_type = #tpu.core_type<tc>, window_params = [{transform_indices = @transform_0, window_bounds = array<i64: 39>}, {transform_indices = @transform_1, window_bounds = array<i64: 13>}, {transform_indices = @transform_2, window_bounds = array<i64: 3, 1, 128>}, {transform_indices = @transform_3, window_bounds = array<i64: 1, 1, 128>}]} {
    %c0 = arith.constant 0 : index
    %c0_0 = arith.constant 0 : index
    %c0_1 = arith.constant 0 : index
    %0 = vector.load %arg3[%c0, %c0_0, %c0_1] : memref<3x1x128xf32, #tpu.memory_space<vmem>>, vector<1x1x128xf32>
    %1 = vector.shape_cast %0 : vector<1x1x128xf32> to vector<1x128xf32>
    %c1 = arith.constant 1 : index
    %c0_2 = arith.constant 0 : index
    %c0_3 = arith.constant 0 : index
    %2 = vector.load %arg3[%c1, %c0_2, %c0_3] : memref<3x1x128xf32, #tpu.memory_space<vmem>>, vector<1x1x128xf32>
    %3 = vector.shape_cast %2 : vector<1x1x128xf32> to vector<1x128xf32>
    %c2 = arith.constant 2 : index
    %c0_4 = arith.constant 0 : index
    %c0_5 = arith.constant 0 : index
    %4 = vector.load %arg3[%c2, %c0_4, %c0_5] : memref<3x1x128xf32, #tpu.memory_space<vmem>>, vector<1x1x128xf32>
    %5 = vector.shape_cast %4 : vector<1x1x128xf32> to vector<1x128xf32>
    %c0_6 = arith.constant 0 : index
    %6 = memref.load %arg2[%c0_6] : memref<13xf32, #tpu.memory_space<smem>>
    %c0_7 = arith.constant 0 : index
    %7 = memref.load %arg1[%c0_7] : memref<39xf32, #tpu.memory_space<smem>>
    %8 = vector.broadcast %7 : f32 to vector<1x128xf32>
    %9 = arith.mulf %8, %1 : vector<1x128xf32>
    %10 = vector.broadcast %6 : f32 to vector<1x128xf32>
    %11 = arith.addf %10, %9 : vector<1x128xf32>
    %c1_8 = arith.constant 1 : index
    %12 = memref.load %arg1[%c1_8] : memref<39xf32, #tpu.memory_space<smem>>
    %13 = vector.broadcast %12 : f32 to vector<1x128xf32>
    %14 = arith.mulf %13, %3 : vector<1x128xf32>
    %15 = arith.addf %11, %14 : vector<1x128xf32>
    %c2_9 = arith.constant 2 : index
    %16 = memref.load %arg1[%c2_9] : memref<39xf32, #tpu.memory_space<smem>>
    %17 = vector.broadcast %16 : f32 to vector<1x128xf32>
    %18 = arith.mulf %17, %5 : vector<1x128xf32>
    %19 = arith.addf %15, %18 : vector<1x128xf32>
    %cst = arith.constant 5.000000e-01 : f32
    %20 = vector.broadcast %cst : f32 to vector<1x128xf32>
    %21 = arith.mulf %20, %19 : vector<1x128xf32>
    %cst_10 = arith.constant 4.471500e-02 : f32
    %22 = vector.broadcast %cst_10 : f32 to vector<1x128xf32>
    %23 = arith.mulf %22, %19 : vector<1x128xf32>
    %24 = arith.mulf %23, %19 : vector<1x128xf32>
    %25 = arith.mulf %24, %19 : vector<1x128xf32>
    %26 = arith.addf %19, %25 : vector<1x128xf32>
    %cst_11 = arith.constant 0.797884583 : f32
    %27 = vector.broadcast %cst_11 : f32 to vector<1x128xf32>
    %28 = arith.mulf %27, %26 : vector<1x128xf32>
    %29 = math.tanh %28 : vector<1x128xf32>
    %cst_12 = arith.constant 1.000000e+00 : f32
    %30 = vector.broadcast %cst_12 : f32 to vector<1x128xf32>
    %31 = arith.addf %30, %29 : vector<1x128xf32>
    %32 = arith.mulf %21, %31 : vector<1x128xf32>
    %33 = arith.addf %1, %32 : vector<1x128xf32>
    %c1_13 = arith.constant 1 : index
    %34 = memref.load %arg2[%c1_13] : memref<13xf32, #tpu.memory_space<smem>>
    %c3 = arith.constant 3 : index
    %35 = memref.load %arg1[%c3] : memref<39xf32, #tpu.memory_space<smem>>
    %36 = vector.broadcast %35 : f32 to vector<1x128xf32>
    %37 = arith.mulf %36, %1 : vector<1x128xf32>
    %38 = vector.broadcast %34 : f32 to vector<1x128xf32>
    %39 = arith.addf %38, %37 : vector<1x128xf32>
    %c4 = arith.constant 4 : index
    %40 = memref.load %arg1[%c4] : memref<39xf32, #tpu.memory_space<smem>>
    %41 = vector.broadcast %40 : f32 to vector<1x128xf32>
    %42 = arith.mulf %41, %3 : vector<1x128xf32>
    %43 = arith.addf %39, %42 : vector<1x128xf32>
    %c5 = arith.constant 5 : index
    %44 = memref.load %arg1[%c5] : memref<39xf32, #tpu.memory_space<smem>>
    %45 = vector.broadcast %44 : f32 to vector<1x128xf32>
    %46 = arith.mulf %45, %5 : vector<1x128xf32>
    %47 = arith.addf %43, %46 : vector<1x128xf32>
    %cst_14 = arith.constant 5.000000e-01 : f32
    %48 = vector.broadcast %cst_14 : f32 to vector<1x128xf32>
    %49 = arith.mulf %48, %47 : vector<1x128xf32>
    %cst_15 = arith.constant 4.471500e-02 : f32
    %50 = vector.broadcast %cst_15 : f32 to vector<1x128xf32>
    %51 = arith.mulf %50, %47 : vector<1x128xf32>
    %52 = arith.mulf %51, %47 : vector<1x128xf32>
    %53 = arith.mulf %52, %47 : vector<1x128xf32>
    %54 = arith.addf %47, %53 : vector<1x128xf32>
    %cst_16 = arith.constant 0.797884583 : f32
    %55 = vector.broadcast %cst_16 : f32 to vector<1x128xf32>
    %56 = arith.mulf %55, %54 : vector<1x128xf32>
    %57 = math.tanh %56 : vector<1x128xf32>
    %cst_17 = arith.constant 1.000000e+00 : f32
    %58 = vector.broadcast %cst_17 : f32 to vector<1x128xf32>
    %59 = arith.addf %58, %57 : vector<1x128xf32>
    %60 = arith.mulf %49, %59 : vector<1x128xf32>
    %61 = arith.addf %3, %60 : vector<1x128xf32>
    %c2_18 = arith.constant 2 : index
    %62 = memref.load %arg2[%c2_18] : memref<13xf32, #tpu.memory_space<smem>>
    %c6 = arith.constant 6 : index
    %63 = memref.load %arg1[%c6] : memref<39xf32, #tpu.memory_space<smem>>
    %64 = vector.broadcast %63 : f32 to vector<1x128xf32>
    %65 = arith.mulf %64, %1 : vector<1x128xf32>
    %66 = vector.broadcast %62 : f32 to vector<1x128xf32>
    %67 = arith.addf %66, %65 : vector<1x128xf32>
    %c7 = arith.constant 7 : index
    %68 = memref.load %arg1[%c7] : memref<39xf32, #tpu.memory_space<smem>>
    %69 = vector.broadcast %68 : f32 to vector<1x128xf32>
    %70 = arith.mulf %69, %3 : vector<1x128xf32>
    %71 = arith.addf %67, %70 : vector<1x128xf32>
    %c8 = arith.constant 8 : index
    %72 = memref.load %arg1[%c8] : memref<39xf32, #tpu.memory_space<smem>>
    %73 = vector.broadcast %72 : f32 to vector<1x128xf32>
    %74 = arith.mulf %73, %5 : vector<1x128xf32>
    %75 = arith.addf %71, %74 : vector<1x128xf32>
    %cst_19 = arith.constant 5.000000e-01 : f32
    %76 = vector.broadcast %cst_19 : f32 to vector<1x128xf32>
    %77 = arith.mulf %76, %75 : vector<1x128xf32>
    %cst_20 = arith.constant 4.471500e-02 : f32
    %78 = vector.broadcast %cst_20 : f32 to vector<1x128xf32>
    %79 = arith.mulf %78, %75 : vector<1x128xf32>
    %80 = arith.mulf %79, %75 : vector<1x128xf32>
    %81 = arith.mulf %80, %75 : vector<1x128xf32>
    %82 = arith.addf %75, %81 : vector<1x128xf32>
    %cst_21 = arith.constant 0.797884583 : f32
    %83 = vector.broadcast %cst_21 : f32 to vector<1x128xf32>
    %84 = arith.mulf %83, %82 : vector<1x128xf32>
    %85 = math.tanh %84 : vector<1x128xf32>
    %cst_22 = arith.constant 1.000000e+00 : f32
    %86 = vector.broadcast %cst_22 : f32 to vector<1x128xf32>
    %87 = arith.addf %86, %85 : vector<1x128xf32>
    %88 = arith.mulf %77, %87 : vector<1x128xf32>
    %89 = arith.addf %5, %88 : vector<1x128xf32>
    %c3_23 = arith.constant 3 : index
    %90 = memref.load %arg2[%c3_23] : memref<13xf32, #tpu.memory_space<smem>>
    %c9 = arith.constant 9 : index
    %91 = memref.load %arg1[%c9] : memref<39xf32, #tpu.memory_space<smem>>
    %92 = vector.broadcast %91 : f32 to vector<1x128xf32>
    %93 = arith.mulf %92, %33 : vector<1x128xf32>
    %94 = vector.broadcast %90 : f32 to vector<1x128xf32>
    %95 = arith.addf %94, %93 : vector<1x128xf32>
    %c10 = arith.constant 10 : index
    %96 = memref.load %arg1[%c10] : memref<39xf32, #tpu.memory_space<smem>>
    %97 = vector.broadcast %96 : f32 to vector<1x128xf32>
    %98 = arith.mulf %97, %61 : vector<1x128xf32>
    %99 = arith.addf %95, %98 : vector<1x128xf32>
    %c11 = arith.constant 11 : index
    %100 = memref.load %arg1[%c11] : memref<39xf32, #tpu.memory_space<smem>>
    %101 = vector.broadcast %100 : f32 to vector<1x128xf32>
    %102 = arith.mulf %101, %89 : vector<1x128xf32>
    %103 = arith.addf %99, %102 : vector<1x128xf32>
    %cst_24 = arith.constant 5.000000e-01 : f32
    %104 = vector.broadcast %cst_24 : f32 to vector<1x128xf32>
    %105 = arith.mulf %104, %103 : vector<1x128xf32>
    %cst_25 = arith.constant 4.471500e-02 : f32
    %106 = vector.broadcast %cst_25 : f32 to vector<1x128xf32>
    %107 = arith.mulf %106, %103 : vector<1x128xf32>
    %108 = arith.mulf %107, %103 : vector<1x128xf32>
    %109 = arith.mulf %108, %103 : vector<1x128xf32>
    %110 = arith.addf %103, %109 : vector<1x128xf32>
    %cst_26 = arith.constant 0.797884583 : f32
    %111 = vector.broadcast %cst_26 : f32 to vector<1x128xf32>
    %112 = arith.mulf %111, %110 : vector<1x128xf32>
    %113 = math.tanh %112 : vector<1x128xf32>
    %cst_27 = arith.constant 1.000000e+00 : f32
    %114 = vector.broadcast %cst_27 : f32 to vector<1x128xf32>
    %115 = arith.addf %114, %113 : vector<1x128xf32>
    %116 = arith.mulf %105, %115 : vector<1x128xf32>
    %117 = arith.addf %33, %116 : vector<1x128xf32>
    %c4_28 = arith.constant 4 : index
    %118 = memref.load %arg2[%c4_28] : memref<13xf32, #tpu.memory_space<smem>>
    %c12 = arith.constant 12 : index
    %119 = memref.load %arg1[%c12] : memref<39xf32, #tpu.memory_space<smem>>
    %120 = vector.broadcast %119 : f32 to vector<1x128xf32>
    %121 = arith.mulf %120, %33 : vector<1x128xf32>
    %122 = vector.broadcast %118 : f32 to vector<1x128xf32>
    %123 = arith.addf %122, %121 : vector<1x128xf32>
    %c13 = arith.constant 13 : index
    %124 = memref.load %arg1[%c13] : memref<39xf32, #tpu.memory_space<smem>>
    %125 = vector.broadcast %124 : f32 to vector<1x128xf32>
    %126 = arith.mulf %125, %61 : vector<1x128xf32>
    %127 = arith.addf %123, %126 : vector<1x128xf32>
    %c14 = arith.constant 14 : index
    %128 = memref.load %arg1[%c14] : memref<39xf32, #tpu.memory_space<smem>>
    %129 = vector.broadcast %128 : f32 to vector<1x128xf32>
    %130 = arith.mulf %129, %89 : vector<1x128xf32>
    %131 = arith.addf %127, %130 : vector<1x128xf32>
    %cst_29 = arith.constant 5.000000e-01 : f32
    %132 = vector.broadcast %cst_29 : f32 to vector<1x128xf32>
    %133 = arith.mulf %132, %131 : vector<1x128xf32>
    %cst_30 = arith.constant 4.471500e-02 : f32
    %134 = vector.broadcast %cst_30 : f32 to vector<1x128xf32>
    %135 = arith.mulf %134, %131 : vector<1x128xf32>
    %136 = arith.mulf %135, %131 : vector<1x128xf32>
    %137 = arith.mulf %136, %131 : vector<1x128xf32>
    %138 = arith.addf %131, %137 : vector<1x128xf32>
    %cst_31 = arith.constant 0.797884583 : f32
    %139 = vector.broadcast %cst_31 : f32 to vector<1x128xf32>
    %140 = arith.mulf %139, %138 : vector<1x128xf32>
    %141 = math.tanh %140 : vector<1x128xf32>
    %cst_32 = arith.constant 1.000000e+00 : f32
    %142 = vector.broadcast %cst_32 : f32 to vector<1x128xf32>
    %143 = arith.addf %142, %141 : vector<1x128xf32>
    %144 = arith.mulf %133, %143 : vector<1x128xf32>
    %145 = arith.addf %61, %144 : vector<1x128xf32>
    %c5_33 = arith.constant 5 : index
    %146 = memref.load %arg2[%c5_33] : memref<13xf32, #tpu.memory_space<smem>>
    %c15 = arith.constant 15 : index
    %147 = memref.load %arg1[%c15] : memref<39xf32, #tpu.memory_space<smem>>
    %148 = vector.broadcast %147 : f32 to vector<1x128xf32>
    %149 = arith.mulf %148, %33 : vector<1x128xf32>
    %150 = vector.broadcast %146 : f32 to vector<1x128xf32>
    %151 = arith.addf %150, %149 : vector<1x128xf32>
    %c16 = arith.constant 16 : index
    %152 = memref.load %arg1[%c16] : memref<39xf32, #tpu.memory_space<smem>>
    %153 = vector.broadcast %152 : f32 to vector<1x128xf32>
    %154 = arith.mulf %153, %61 : vector<1x128xf32>
    %155 = arith.addf %151, %154 : vector<1x128xf32>
    %c17 = arith.constant 17 : index
    %156 = memref.load %arg1[%c17] : memref<39xf32, #tpu.memory_space<smem>>
    %157 = vector.broadcast %156 : f32 to vector<1x128xf32>
    %158 = arith.mulf %157, %89 : vector<1x128xf32>
    %159 = arith.addf %155, %158 : vector<1x128xf32>
    %cst_34 = arith.constant 5.000000e-01 : f32
    %160 = vector.broadcast %cst_34 : f32 to vector<1x128xf32>
    %161 = arith.mulf %160, %159 : vector<1x128xf32>
    %cst_35 = arith.constant 4.471500e-02 : f32
    %162 = vector.broadcast %cst_35 : f32 to vector<1x128xf32>
    %163 = arith.mulf %162, %159 : vector<1x128xf32>
    %164 = arith.mulf %163, %159 : vector<1x128xf32>
    %165 = arith.mulf %164, %159 : vector<1x128xf32>
    %166 = arith.addf %159, %165 : vector<1x128xf32>
    %cst_36 = arith.constant 0.797884583 : f32
    %167 = vector.broadcast %cst_36 : f32 to vector<1x128xf32>
    %168 = arith.mulf %167, %166 : vector<1x128xf32>
    %169 = math.tanh %168 : vector<1x128xf32>
    %cst_37 = arith.constant 1.000000e+00 : f32
    %170 = vector.broadcast %cst_37 : f32 to vector<1x128xf32>
    %171 = arith.addf %170, %169 : vector<1x128xf32>
    %172 = arith.mulf %161, %171 : vector<1x128xf32>
    %173 = arith.addf %89, %172 : vector<1x128xf32>
    %c6_38 = arith.constant 6 : index
    %174 = memref.load %arg2[%c6_38] : memref<13xf32, #tpu.memory_space<smem>>
    %c18 = arith.constant 18 : index
    %175 = memref.load %arg1[%c18] : memref<39xf32, #tpu.memory_space<smem>>
    %176 = vector.broadcast %175 : f32 to vector<1x128xf32>
    %177 = arith.mulf %176, %117 : vector<1x128xf32>
    %178 = vector.broadcast %174 : f32 to vector<1x128xf32>
    %179 = arith.addf %178, %177 : vector<1x128xf32>
    %c19 = arith.constant 19 : index
    %180 = memref.load %arg1[%c19] : memref<39xf32, #tpu.memory_space<smem>>
    %181 = vector.broadcast %180 : f32 to vector<1x128xf32>
    %182 = arith.mulf %181, %145 : vector<1x128xf32>
    %183 = arith.addf %179, %182 : vector<1x128xf32>
    %c20 = arith.constant 20 : index
    %184 = memref.load %arg1[%c20] : memref<39xf32, #tpu.memory_space<smem>>
    %185 = vector.broadcast %184 : f32 to vector<1x128xf32>
    %186 = arith.mulf %185, %173 : vector<1x128xf32>
    %187 = arith.addf %183, %186 : vector<1x128xf32>
    %cst_39 = arith.constant 5.000000e-01 : f32
    %188 = vector.broadcast %cst_39 : f32 to vector<1x128xf32>
    %189 = arith.mulf %188, %187 : vector<1x128xf32>
    %cst_40 = arith.constant 4.471500e-02 : f32
    %190 = vector.broadcast %cst_40 : f32 to vector<1x128xf32>
    %191 = arith.mulf %190, %187 : vector<1x128xf32>
    %192 = arith.mulf %191, %187 : vector<1x128xf32>
    %193 = arith.mulf %192, %187 : vector<1x128xf32>
    %194 = arith.addf %187, %193 : vector<1x128xf32>
    %cst_41 = arith.constant 0.797884583 : f32
    %195 = vector.broadcast %cst_41 : f32 to vector<1x128xf32>
    %196 = arith.mulf %195, %194 : vector<1x128xf32>
    %197 = math.tanh %196 : vector<1x128xf32>
    %cst_42 = arith.constant 1.000000e+00 : f32
    %198 = vector.broadcast %cst_42 : f32 to vector<1x128xf32>
    %199 = arith.addf %198, %197 : vector<1x128xf32>
    %200 = arith.mulf %189, %199 : vector<1x128xf32>
    %201 = arith.addf %117, %200 : vector<1x128xf32>
    %c7_43 = arith.constant 7 : index
    %202 = memref.load %arg2[%c7_43] : memref<13xf32, #tpu.memory_space<smem>>
    %c21 = arith.constant 21 : index
    %203 = memref.load %arg1[%c21] : memref<39xf32, #tpu.memory_space<smem>>
    %204 = vector.broadcast %203 : f32 to vector<1x128xf32>
    %205 = arith.mulf %204, %117 : vector<1x128xf32>
    %206 = vector.broadcast %202 : f32 to vector<1x128xf32>
    %207 = arith.addf %206, %205 : vector<1x128xf32>
    %c22 = arith.constant 22 : index
    %208 = memref.load %arg1[%c22] : memref<39xf32, #tpu.memory_space<smem>>
    %209 = vector.broadcast %208 : f32 to vector<1x128xf32>
    %210 = arith.mulf %209, %145 : vector<1x128xf32>
    %211 = arith.addf %207, %210 : vector<1x128xf32>
    %c23 = arith.constant 23 : index
    %212 = memref.load %arg1[%c23] : memref<39xf32, #tpu.memory_space<smem>>
    %213 = vector.broadcast %212 : f32 to vector<1x128xf32>
    %214 = arith.mulf %213, %173 : vector<1x128xf32>
    %215 = arith.addf %211, %214 : vector<1x128xf32>
    %cst_44 = arith.constant 5.000000e-01 : f32
    %216 = vector.broadcast %cst_44 : f32 to vector<1x128xf32>
    %217 = arith.mulf %216, %215 : vector<1x128xf32>
    %cst_45 = arith.constant 4.471500e-02 : f32
    %218 = vector.broadcast %cst_45 : f32 to vector<1x128xf32>
    %219 = arith.mulf %218, %215 : vector<1x128xf32>
    %220 = arith.mulf %219, %215 : vector<1x128xf32>
    %221 = arith.mulf %220, %215 : vector<1x128xf32>
    %222 = arith.addf %215, %221 : vector<1x128xf32>
    %cst_46 = arith.constant 0.797884583 : f32
    %223 = vector.broadcast %cst_46 : f32 to vector<1x128xf32>
    %224 = arith.mulf %223, %222 : vector<1x128xf32>
    %225 = math.tanh %224 : vector<1x128xf32>
    %cst_47 = arith.constant 1.000000e+00 : f32
    %226 = vector.broadcast %cst_47 : f32 to vector<1x128xf32>
    %227 = arith.addf %226, %225 : vector<1x128xf32>
    %228 = arith.mulf %217, %227 : vector<1x128xf32>
    %229 = arith.addf %145, %228 : vector<1x128xf32>
    %c8_48 = arith.constant 8 : index
    %230 = memref.load %arg2[%c8_48] : memref<13xf32, #tpu.memory_space<smem>>
    %c24 = arith.constant 24 : index
    %231 = memref.load %arg1[%c24] : memref<39xf32, #tpu.memory_space<smem>>
    %232 = vector.broadcast %231 : f32 to vector<1x128xf32>
    %233 = arith.mulf %232, %117 : vector<1x128xf32>
    %234 = vector.broadcast %230 : f32 to vector<1x128xf32>
    %235 = arith.addf %234, %233 : vector<1x128xf32>
    %c25 = arith.constant 25 : index
    %236 = memref.load %arg1[%c25] : memref<39xf32, #tpu.memory_space<smem>>
    %237 = vector.broadcast %236 : f32 to vector<1x128xf32>
    %238 = arith.mulf %237, %145 : vector<1x128xf32>
    %239 = arith.addf %235, %238 : vector<1x128xf32>
    %c26 = arith.constant 26 : index
    %240 = memref.load %arg1[%c26] : memref<39xf32, #tpu.memory_space<smem>>
    %241 = vector.broadcast %240 : f32 to vector<1x128xf32>
    %242 = arith.mulf %241, %173 : vector<1x128xf32>
    %243 = arith.addf %239, %242 : vector<1x128xf32>
    %cst_49 = arith.constant 5.000000e-01 : f32
    %244 = vector.broadcast %cst_49 : f32 to vector<1x128xf32>
    %245 = arith.mulf %244, %243 : vector<1x128xf32>
    %cst_50 = arith.constant 4.471500e-02 : f32
    %246 = vector.broadcast %cst_50 : f32 to vector<1x128xf32>
    %247 = arith.mulf %246, %243 : vector<1x128xf32>
    %248 = arith.mulf %247, %243 : vector<1x128xf32>
    %249 = arith.mulf %248, %243 : vector<1x128xf32>
    %250 = arith.addf %243, %249 : vector<1x128xf32>
    %cst_51 = arith.constant 0.797884583 : f32
    %251 = vector.broadcast %cst_51 : f32 to vector<1x128xf32>
    %252 = arith.mulf %251, %250 : vector<1x128xf32>
    %253 = math.tanh %252 : vector<1x128xf32>
    %cst_52 = arith.constant 1.000000e+00 : f32
    %254 = vector.broadcast %cst_52 : f32 to vector<1x128xf32>
    %255 = arith.addf %254, %253 : vector<1x128xf32>
    %256 = arith.mulf %245, %255 : vector<1x128xf32>
    %257 = arith.addf %173, %256 : vector<1x128xf32>
    %c9_53 = arith.constant 9 : index
    %258 = memref.load %arg2[%c9_53] : memref<13xf32, #tpu.memory_space<smem>>
    %c27 = arith.constant 27 : index
    %259 = memref.load %arg1[%c27] : memref<39xf32, #tpu.memory_space<smem>>
    %260 = vector.broadcast %259 : f32 to vector<1x128xf32>
    %261 = arith.mulf %260, %201 : vector<1x128xf32>
    %262 = vector.broadcast %258 : f32 to vector<1x128xf32>
    %263 = arith.addf %262, %261 : vector<1x128xf32>
    %c28 = arith.constant 28 : index
    %264 = memref.load %arg1[%c28] : memref<39xf32, #tpu.memory_space<smem>>
    %265 = vector.broadcast %264 : f32 to vector<1x128xf32>
    %266 = arith.mulf %265, %229 : vector<1x128xf32>
    %267 = arith.addf %263, %266 : vector<1x128xf32>
    %c29 = arith.constant 29 : index
    %268 = memref.load %arg1[%c29] : memref<39xf32, #tpu.memory_space<smem>>
    %269 = vector.broadcast %268 : f32 to vector<1x128xf32>
    %270 = arith.mulf %269, %257 : vector<1x128xf32>
    %271 = arith.addf %267, %270 : vector<1x128xf32>
    %cst_54 = arith.constant 5.000000e-01 : f32
    %272 = vector.broadcast %cst_54 : f32 to vector<1x128xf32>
    %273 = arith.mulf %272, %271 : vector<1x128xf32>
    %cst_55 = arith.constant 4.471500e-02 : f32
    %274 = vector.broadcast %cst_55 : f32 to vector<1x128xf32>
    %275 = arith.mulf %274, %271 : vector<1x128xf32>
    %276 = arith.mulf %275, %271 : vector<1x128xf32>
    %277 = arith.mulf %276, %271 : vector<1x128xf32>
    %278 = arith.addf %271, %277 : vector<1x128xf32>
    %cst_56 = arith.constant 0.797884583 : f32
    %279 = vector.broadcast %cst_56 : f32 to vector<1x128xf32>
    %280 = arith.mulf %279, %278 : vector<1x128xf32>
    %281 = math.tanh %280 : vector<1x128xf32>
    %cst_57 = arith.constant 1.000000e+00 : f32
    %282 = vector.broadcast %cst_57 : f32 to vector<1x128xf32>
    %283 = arith.addf %282, %281 : vector<1x128xf32>
    %284 = arith.mulf %273, %283 : vector<1x128xf32>
    %285 = arith.addf %201, %284 : vector<1x128xf32>
    %c10_58 = arith.constant 10 : index
    %286 = memref.load %arg2[%c10_58] : memref<13xf32, #tpu.memory_space<smem>>
    %c30 = arith.constant 30 : index
    %287 = memref.load %arg1[%c30] : memref<39xf32, #tpu.memory_space<smem>>
    %288 = vector.broadcast %287 : f32 to vector<1x128xf32>
    %289 = arith.mulf %288, %201 : vector<1x128xf32>
    %290 = vector.broadcast %286 : f32 to vector<1x128xf32>
    %291 = arith.addf %290, %289 : vector<1x128xf32>
    %c31 = arith.constant 31 : index
    %292 = memref.load %arg1[%c31] : memref<39xf32, #tpu.memory_space<smem>>
    %293 = vector.broadcast %292 : f32 to vector<1x128xf32>
    %294 = arith.mulf %293, %229 : vector<1x128xf32>
    %295 = arith.addf %291, %294 : vector<1x128xf32>
    %c32 = arith.constant 32 : index
    %296 = memref.load %arg1[%c32] : memref<39xf32, #tpu.memory_space<smem>>
    %297 = vector.broadcast %296 : f32 to vector<1x128xf32>
    %298 = arith.mulf %297, %257 : vector<1x128xf32>
    %299 = arith.addf %295, %298 : vector<1x128xf32>
    %cst_59 = arith.constant 5.000000e-01 : f32
    %300 = vector.broadcast %cst_59 : f32 to vector<1x128xf32>
    %301 = arith.mulf %300, %299 : vector<1x128xf32>
    %cst_60 = arith.constant 4.471500e-02 : f32
    %302 = vector.broadcast %cst_60 : f32 to vector<1x128xf32>
    %303 = arith.mulf %302, %299 : vector<1x128xf32>
    %304 = arith.mulf %303, %299 : vector<1x128xf32>
    %305 = arith.mulf %304, %299 : vector<1x128xf32>
    %306 = arith.addf %299, %305 : vector<1x128xf32>
    %cst_61 = arith.constant 0.797884583 : f32
    %307 = vector.broadcast %cst_61 : f32 to vector<1x128xf32>
    %308 = arith.mulf %307, %306 : vector<1x128xf32>
    %309 = math.tanh %308 : vector<1x128xf32>
    %cst_62 = arith.constant 1.000000e+00 : f32
    %310 = vector.broadcast %cst_62 : f32 to vector<1x128xf32>
    %311 = arith.addf %310, %309 : vector<1x128xf32>
    %312 = arith.mulf %301, %311 : vector<1x128xf32>
    %313 = arith.addf %229, %312 : vector<1x128xf32>
    %c11_63 = arith.constant 11 : index
    %314 = memref.load %arg2[%c11_63] : memref<13xf32, #tpu.memory_space<smem>>
    %c33 = arith.constant 33 : index
    %315 = memref.load %arg1[%c33] : memref<39xf32, #tpu.memory_space<smem>>
    %316 = vector.broadcast %315 : f32 to vector<1x128xf32>
    %317 = arith.mulf %316, %201 : vector<1x128xf32>
    %318 = vector.broadcast %314 : f32 to vector<1x128xf32>
    %319 = arith.addf %318, %317 : vector<1x128xf32>
    %c34 = arith.constant 34 : index
    %320 = memref.load %arg1[%c34] : memref<39xf32, #tpu.memory_space<smem>>
    %321 = vector.broadcast %320 : f32 to vector<1x128xf32>
    %322 = arith.mulf %321, %229 : vector<1x128xf32>
    %323 = arith.addf %319, %322 : vector<1x128xf32>
    %c35 = arith.constant 35 : index
    %324 = memref.load %arg1[%c35] : memref<39xf32, #tpu.memory_space<smem>>
    %325 = vector.broadcast %324 : f32 to vector<1x128xf32>
    %326 = arith.mulf %325, %257 : vector<1x128xf32>
    %327 = arith.addf %323, %326 : vector<1x128xf32>
    %cst_64 = arith.constant 5.000000e-01 : f32
    %328 = vector.broadcast %cst_64 : f32 to vector<1x128xf32>
    %329 = arith.mulf %328, %327 : vector<1x128xf32>
    %cst_65 = arith.constant 4.471500e-02 : f32
    %330 = vector.broadcast %cst_65 : f32 to vector<1x128xf32>
    %331 = arith.mulf %330, %327 : vector<1x128xf32>
    %332 = arith.mulf %331, %327 : vector<1x128xf32>
    %333 = arith.mulf %332, %327 : vector<1x128xf32>
    %334 = arith.addf %327, %333 : vector<1x128xf32>
    %cst_66 = arith.constant 0.797884583 : f32
    %335 = vector.broadcast %cst_66 : f32 to vector<1x128xf32>
    %336 = arith.mulf %335, %334 : vector<1x128xf32>
    %337 = math.tanh %336 : vector<1x128xf32>
    %cst_67 = arith.constant 1.000000e+00 : f32
    %338 = vector.broadcast %cst_67 : f32 to vector<1x128xf32>
    %339 = arith.addf %338, %337 : vector<1x128xf32>
    %340 = arith.mulf %329, %339 : vector<1x128xf32>
    %341 = arith.addf %257, %340 : vector<1x128xf32>
    %c12_68 = arith.constant 12 : index
    %342 = memref.load %arg2[%c12_68] : memref<13xf32, #tpu.memory_space<smem>>
    %c36 = arith.constant 36 : index
    %343 = memref.load %arg1[%c36] : memref<39xf32, #tpu.memory_space<smem>>
    %344 = vector.broadcast %343 : f32 to vector<1x128xf32>
    %345 = arith.mulf %344, %285 : vector<1x128xf32>
    %346 = vector.broadcast %342 : f32 to vector<1x128xf32>
    %347 = arith.addf %346, %345 : vector<1x128xf32>
    %c37 = arith.constant 37 : index
    %348 = memref.load %arg1[%c37] : memref<39xf32, #tpu.memory_space<smem>>
    %349 = vector.broadcast %348 : f32 to vector<1x128xf32>
    %350 = arith.mulf %349, %313 : vector<1x128xf32>
    %351 = arith.addf %347, %350 : vector<1x128xf32>
    %c38 = arith.constant 38 : index
    %352 = memref.load %arg1[%c38] : memref<39xf32, #tpu.memory_space<smem>>
    %353 = vector.broadcast %352 : f32 to vector<1x128xf32>
    %354 = arith.mulf %353, %341 : vector<1x128xf32>
    %355 = arith.addf %351, %354 : vector<1x128xf32>
    %cst_69 = arith.constant 5.000000e-01 : f32
    %356 = vector.broadcast %cst_69 : f32 to vector<1x128xf32>
    %357 = arith.mulf %356, %355 : vector<1x128xf32>
    %cst_70 = arith.constant 4.471500e-02 : f32
    %358 = vector.broadcast %cst_70 : f32 to vector<1x128xf32>
    %359 = arith.mulf %358, %355 : vector<1x128xf32>
    %360 = arith.mulf %359, %355 : vector<1x128xf32>
    %361 = arith.mulf %360, %355 : vector<1x128xf32>
    %362 = arith.addf %355, %361 : vector<1x128xf32>
    %cst_71 = arith.constant 0.797884583 : f32
    %363 = vector.broadcast %cst_71 : f32 to vector<1x128xf32>
    %364 = arith.mulf %363, %362 : vector<1x128xf32>
    %365 = math.tanh %364 : vector<1x128xf32>
    %cst_72 = arith.constant 1.000000e+00 : f32
    %366 = vector.broadcast %cst_72 : f32 to vector<1x128xf32>
    %367 = arith.addf %366, %365 : vector<1x128xf32>
    %368 = arith.mulf %357, %367 : vector<1x128xf32>
    %369 = vector.shape_cast %368 : vector<1x128xf32> to vector<1x1x128xf32>
    %c0_73 = arith.constant 0 : index
    %c0_74 = arith.constant 0 : index
    %c0_75 = arith.constant 0 : index
    %370 = vector.load %arg4[%c0_73, %c0_74, %c0_75] : memref<1x1x128xf32, #tpu.memory_space<vmem>>, vector<1x1x128xf32>
    tpu.vector_store %arg4[%c0_73, %c0_74, %c0_75], %369 {strides = array<i32>} : memref<1x1x128xf32, #tpu.memory_space<vmem>>, vector<1x1x128xf32>,
    return
  }
  func.func @transform_0(%arg0: i32) -> i32 {
    %c0_i32 = arith.constant 0 : i32
    %c0_i32_0 = arith.constant 0 : i32
    return %c0_i32 : i32
  }
  func.func @transform_1(%arg0: i32) -> i32 {
    %c0_i32 = arith.constant 0 : i32
    %c0_i32_0 = arith.constant 0 : i32
    return %c0_i32 : i32
  }
  func.func @transform_2(%arg0: i32) -> (i32, i32, i32) {
    %c0_i32 = arith.constant 0 : i32
    %c0_i32_0 = arith.constant 0 : i32
    %c0_i32_1 = arith.constant 0 : i32
    return %c0_i32, %arg0, %c0_i32_0 : i32, i32, i32
  }
  func.func @transform_3(%arg0: i32) -> (i32, i32, i32) {
    %c0_i32 = arith.constant 0 : i32
    %c0_i32_0 = arith.constant 0 : i32
    %c0_i32_1 = arith.constant 0 : i32
    return %c0_i32, %arg0, %c0_i32_0 : i32, i32, i32
  }
}

</mosaic_0001>

<llo_original>
// kernel: forward.1
$region0: #{forward.1}
  #allocation0 [shape = 'u32[]', space=smem, size = 0x4, offset = 0x4, fixed_abs, tag = 'smem constant byte address 0x4 - core index']
  #allocation1 [shape = 'u32[144,128]{1,0:T(1,128)}', space=vmem, size = 0x12000, scoped, tag = 'internal scratch']
  %s0 = inlined_call_operand.vmem [shape: f32[39], index: 0, kind: input, shape index: {}]
  %s1 = inlined_call_operand.vmem [shape: f32[13], index: 1, kind: input, shape index: {}]
  %s2 = inlined_call_operand.vmem [shape: f32[3,1,128], index: 2, kind: input, shape index: {}]
  %s3 = inlined_call_operand.vmem [shape: f32[1,1,128], index: 3, kind: output, shape index: {}]
  %s4 = sld [smem:[#allocation0]]
  $region30: #{forward.1} parent=0
    _
  %s6 = ssub.s32 1, %s4
  %s7 = scalar_select 0, %s6, %s4
  $region1: #{forward.1} parent=0
    #allocation2 [shape = 'u8[512]{0}', space=smem, size = 0x200, scoped, tag = 'input window, operand 0, single buffered']
    #allocation3 [shape = 's32[1]{0}', space=sflag, size = 0x4, scoped, tag = 'scoped memory for forward.1']
    #allocation4 [shape = 'u8[512]{0}', space=smem, size = 0x200, scoped, tag = 'input window, operand 1, single buffered']
    #allocation5 [shape = 's32[1]{0}', space=sflag, size = 0x4, scoped, tag = 'scoped memory for forward.1']
    %8 = vsyncpa [#allocation3], 0
    %9 = vsyncpa [#allocation5], 0
    // Predicated region
    $region2: #{forward.1} parent=1 // pred_check
      _
    $region3: #{forward.1} parent=1 // pred_check_branch
      %11 = sbr.rel (0) target = $region5
    $region4: #{forward.1} parent=1 // pred_region
      %s13 = ssub.s32 16, 16
      %14 = vsyncadd [#allocation3], %s13
      %s16 = sshll.u32 %s0, 4
      %s17 = int_to_ptr.vmem [resolvable:$true] %s16
      %19 = dma.vmem_to_smem %s17, 16, [#allocation2], [#allocation3]
    $region5: #{forward.1} parent=1 // pred_fallthru
      _
    // Predicated region
    $region6: #{forward.1} parent=1 // pred_check
      _
    $region7: #{forward.1} parent=1 // pred_check_branch
      %21 = sbr.rel (0) target = $region9
    $region8: #{forward.1} parent=1 // pred_region
      %s23 = ssub.s32 16, 16
      %24 = vsyncadd [#allocation5], %s23
      %s26 = sshll.u32 %s1, 4
      %s27 = int_to_ptr.vmem [resolvable:$true] %s26
      %29 = dma.vmem_to_smem %s27, 16, [#allocation4], [#allocation5]
    $region9: #{forward.1} parent=1 // pred_fallthru
      _
    // Predicated region
    $region10: #{forward.1} parent=1 // pred_check
      _
    $region11: #{forward.1} parent=1 // pred_check_branch
      %31 = sbr.rel (0) target = $region13
    $region12: #{forward.1} parent=1 // pred_region
      _
    $region13: #{forward.1} parent=1 // pred_fallthru
      _
    // Predicated region
    $region14: #{forward.1} parent=1 // pred_check
      _
    $region15: #{forward.1} parent=1 // pred_check_branch
      %33 = sbr.rel (0) target = $region17
    $region16: #{forward.1} parent=1 // pred_region
      %34 = dma.done [#allocation3], 16
    $region17: #{forward.1} parent=1 // pred_fallthru
      _
    // Predicated region
    $region18: #{forward.1} parent=1 // pred_check
      _
    $region19: #{forward.1} parent=1 // pred_check_branch
      %36 = sbr.rel (0) target = $region21
    $region20: #{forward.1} parent=1 // pred_region
      %37 = dma.done [#allocation5], 16
    $region21: #{forward.1} parent=1 // pred_fallthru
      _
    %38 = sfence
    %v39 = vld [vmem:[%s2] sm:$0x1]
    %s40 = scalar_lea.vmem %s2, 1
    %v41 = vld [vmem:[%s40] sm:$0x1]
    %s42 = scalar_lea.vmem %s2, 2
    %v43 = vld [vmem:[%s42] sm:$0x1]
    %s44 = sld [smem:[#allocation4]]
    %s45 = sld [smem:[#allocation2]]
    %v46 = vstv %s45
    %v47 = vmul.f32 %v46, %v39
    %v48 = vstv %s44
    %v49 = vadd.f32 %v48, %v47
    %s50 = sld [smem:[#allocation2 + $0x1]]
    %v51 = vstv %s50
    %v52 = vmul.f32 %v51, %v41
    %v53 = vadd.f32 %v49, %v52
    %s54 = sld [smem:[#allocation2 + $0x2]]
    %v55 = vstv %s54
    %v56 = vmul.f32 %v55, %v43
    %v57 = vadd.f32 %v53, %v56
    %v58 = vmul.f32 %v57, 0.5
    %v59 = vmul.f32 %v57, 0.044715
    %v60 = vmul.f32 %v59, %v57
    %v61 = vmul.f32 %v60, %v57
    %v62 = vadd.f32 %v57, %v61
    %v63 = vmul.f32 %v62, 0.7978846
    %v64 = vtanh.pop %v63
    %v65 = vadd.f32 %v64, 1.0
    %v66 = vmul.f32 %v58, %v65
    %v67 = vadd.f32 %v39, %v66
    %s68 = sld [smem:[#allocation4 + $0x1]]
    %s69 = sld [smem:[#allocation2 + $0x3]]
    %v70 = vstv %s69
    %v71 = vmul.f32 %v70, %v39
    %v72 = vstv %s68
    %v73 = vadd.f32 %v72, %v71
    %s74 = sld [smem:[#allocation2 + $0x4]]
    %v75 = vstv %s74
    %v76 = vmul.f32 %v75, %v41
    %v77 = vadd.f32 %v73, %v76
    %s78 = sld [smem:[#allocation2 + $0x5]]
    %v79 = vstv %s78
    %v80 = vmul.f32 %v79, %v43
    %v81 = vadd.f32 %v77, %v80
    %v82 = vmul.f32 %v81, 0.5
    %v83 = vmul.f32 %v81, 0.044715
    %v84 = vmul.f32 %v83, %v81
    %v85 = vmul.f32 %v84, %v81
    %v86 = vadd.f32 %v81, %v85
    %v87 = vmul.f32 %v86, 0.7978846
    %v88 = vtanh.pop %v87
    %v89 = vadd.f32 %v88, 1.0
    %v90 = vmul.f32 %v82, %v89
    %v91 = vadd.f32 %v41, %v90
    %s92 = sld [smem:[#allocation4 + $0x2]]
    %s93 = sld [smem:[#allocation2 + $0x6]]
    %v94 = vstv %s93
    %v95 = vmul.f32 %v94, %v39
    %v96 = vstv %s92
    %v97 = vadd.f32 %v96, %v95
    %s98 = sld [smem:[#allocation2 + $0x7]]
    %v99 = vstv %s98
    %v100 = vmul.f32 %v99, %v41
    %v101 = vadd.f32 %v97, %v100
    %s102 = sld [smem:[#allocation2 + $0x8]]
    %v103 = vstv %s102
    %v104 = vmul.f32 %v103, %v43
    %v105 = vadd.f32 %v101, %v104
    %v106 = vmul.f32 %v105, 0.5
    %v107 = vmul.f32 %v105, 0.044715
    %v108 = vmul.f32 %v107, %v105
    %v109 = vmul.f32 %v108, %v105
    %v110 = vadd.f32 %v105, %v109
    %v111 = vmul.f32 %v110, 0.7978846
    %v112 = vtanh.pop %v111
    %v113 = vadd.f32 %v112, 1.0
    %v114 = vmul.f32 %v106, %v113
    %v115 = vadd.f32 %v43, %v114
    %s116 = sld [smem:[#allocation4 + $0x3]]
    %s117 = sld [smem:[#allocation2 + $0x9]]
    %v118 = vstv %s117
    %v119 = vmul.f32 %v118, %v67
    %v120 = vstv %s116
    %v121 = vadd.f32 %v120, %v119
    %s122 = sld [smem:[#allocation2 + $0xa]]
    %v123 = vstv %s122
    %v124 = vmul.f32 %v123, %v91
    %v125 = vadd.f32 %v121, %v124
    %s126 = sld [smem:[#allocation2 + $0xb]]
    %v127 = vstv %s126
    %v128 = vmul.f32 %v127, %v115
    %v129 = vadd.f32 %v125, %v128
    %v130 = vmul.f32 %v129, 0.5
    %v131 = vmul.f32 %v129, 0.044715
    %v132 = vmul.f32 %v131, %v129
    %v133 = vmul.f32 %v132, %v129
    %v134 = vadd.f32 %v129, %v133
    %v135 = vmul.f32 %v134, 0.7978846
    %v136 = vtanh.pop %v135
    %v137 = vadd.f32 %v136, 1.0
    %v138 = vmul.f32 %v130, %v137
    %v139 = vadd.f32 %v67, %v138
    %s140 = sld [smem:[#allocation4 + $0x4]]
    %s141 = sld [smem:[#allocation2 + $0xc]]
    %v142 = vstv %s141
    %v143 = vmul.f32 %v142, %v67
    %v144 = vstv %s140
    %v145 = vadd.f32 %v144, %v143
    %s146 = sld [smem:[#allocation2 + $0xd]]
    %v147 = vstv %s146
    %v148 = vmul.f32 %v147, %v91
    %v149 = vadd.f32 %v145, %v148
    %s150 = sld [smem:[#allocation2 + $0xe]]
    %v151 = vstv %s150
    %v152 = vmul.f32 %v151, %v115
    %v153 = vadd.f32 %v149, %v152
    %v154 = vmul.f32 %v153, 0.5
    %v155 = vmul.f32 %v153, 0.044715
    %v156 = vmul.f32 %v155, %v153
    %v157 = vmul.f32 %v156, %v153
    %v158 = vadd.f32 %v153, %v157
    %v159 = vmul.f32 %v158, 0.7978846
    %v160 = vtanh.pop %v159
    %v161 = vadd.f32 %v160, 1.0
    %v162 = vmul.f32 %v154, %v161
    %v163 = vadd.f32 %v91, %v162
    %s164 = sld [smem:[#allocation4 + $0x5]]
    %s165 = sld [smem:[#allocation2 + $0xf]]
    %v166 = vstv %s165
    %v167 = vmul.f32 %v166, %v67
    %v168 = vstv %s164
    %v169 = vadd.f32 %v168, %v167
    %s170 = sld [smem:[#allocation2 + $0x10]]
    %v171 = vstv %s170
    %v172 = vmul.f32 %v171, %v91
    %v173 = vadd.f32 %v169, %v172
    %s174 = sld [smem:[#allocation2 + $0x11]]
    %v175 = vstv %s174
    %v176 = vmul.f32 %v175, %v115
    %v177 = vadd.f32 %v173, %v176
    %v178 = vmul.f32 %v177, 0.5
    %v179 = vmul.f32 %v177, 0.044715
    %v180 = vmul.f32 %v179, %v177
    %v181 = vmul.f32 %v180, %v177
    %v182 = vadd.f32 %v177, %v181
    %v183 = vmul.f32 %v182, 0.7978846
    %v184 = vtanh.pop %v183
    %v185 = vadd.f32 %v184, 1.0
    %v186 = vmul.f32 %v178, %v185
    %v187 = vadd.f32 %v115, %v186
    %s188 = sld [smem:[#allocation4 + $0x6]]
    %s189 = sld [smem:[#allocation2 + $0x12]]
    %v190 = vstv %s189
    %v191 = vmul.f32 %v190, %v139
    %v192 = vstv %s188
    %v193 = vadd.f32 %v192, %v191
    %s194 = sld [smem:[#allocation2 + $0x13]]
    %v195 = vstv %s194
    %v196 = vmul.f32 %v195, %v163
    %v197 = vadd.f32 %v193, %v196
    %s198 = sld [smem:[#allocation2 + $0x14]]
    %v199 = vstv %s198
    %v200 = vmul.f32 %v199, %v187
    %v201 = vadd.f32 %v197, %v200
    %v202 = vmul.f32 %v201, 0.5
    %v203 = vmul.f32 %v201, 0.044715
    %v204 = vmul.f32 %v203, %v201
    %v205 = vmul.f32 %v204, %v201
    %v206 = vadd.f32 %v201, %v205
    %v207 = vmul.f32 %v206, 0.7978846
    %v208 = vtanh.pop %v207
    %v209 = vadd.f32 %v208, 1.0
    %v210 = vmul.f32 %v202, %v209
    %v211 = vadd.f32 %v139, %v210
    %s212 = sld [smem:[#allocation4 + $0x7]]
    %s213 = sld [smem:[#allocation2 + $0x15]]
    %v214 = vstv %s213
    %v215 = vmul.f32 %v214, %v139
    %v216 = vstv %s212
    %v217 = vadd.f32 %v216, %v215
    %s218 = sld [smem:[#allocation2 + $0x16]]
    %v219 = vstv %s218
    %v220 = vmul.f32 %v219, %v163
    %v221 = vadd.f32 %v217, %v220
    %s222 = sld [smem:[#allocation2 + $0x17]]
    %v223 = vstv %s222
    %v224 = vmul.f32 %v223, %v187
    %v225 = vadd.f32 %v221, %v224
    %v226 = vmul.f32 %v225, 0.5
    %v227 = vmul.f32 %v225, 0.044715
    %v228 = vmul.f32 %v227, %v225
    %v229 = vmul.f32 %v228, %v225
    %v230 = vadd.f32 %v225, %v229
    %v231 = vmul.f32 %v230, 0.7978846
    %v232 = vtanh.pop %v231
    %v233 = vadd.f32 %v232, 1.0
    %v234 = vmul.f32 %v226, %v233
    %v235 = vadd.f32 %v163, %v234
    %s236 = sld [smem:[#allocation4 + $0x8]]
    %s237 = sld [smem:[#allocation2 + $0x18]]
    %v238 = vstv %s237
    %v239 = vmul.f32 %v238, %v139
    %v240 = vstv %s236
    %v241 = vadd.f32 %v240, %v239
    %s242 = sld [smem:[#allocation2 + $0x19]]
    %v243 = vstv %s242
    %v244 = vmul.f32 %v243, %v163
    %v245 = vadd.f32 %v241, %v244
    %s246 = sld [smem:[#allocation2 + $0x1a]]
    %v247 = vstv %s246
    %v248 = vmul.f32 %v247, %v187
    %v249 = vadd.f32 %v245, %v248
    %v250 = vmul.f32 %v249, 0.5
    %v251 = vmul.f32 %v249, 0.044715
    %v252 = vmul.f32 %v251, %v249
    %v253 = vmul.f32 %v252, %v249
    %v254 = vadd.f32 %v249, %v253
    %v255 = vmul.f32 %v254, 0.7978846
    %v256 = vtanh.pop %v255
    %v257 = vadd.f32 %v256, 1.0
    %v258 = vmul.f32 %v250, %v257
    %v259 = vadd.f32 %v187, %v258
    %s260 = sld [smem:[#allocation4 + $0x9]]
    %s261 = sld [smem:[#allocation2 + $0x1b]]
    %v262 = vstv %s261
    %v263 = vmul.f32 %v262, %v211
    %v264 = vstv %s260
    %v265 = vadd.f32 %v264, %v263
    %s266 = sld [smem:[#allocation2 + $0x1c]]
    %v267 = vstv %s266
    %v268 = vmul.f32 %v267, %v235
    %v269 = vadd.f32 %v265, %v268
    %s270 = sld [smem:[#allocation2 + $0x1d]]
    %v271 = vstv %s270
    %v272 = vmul.f32 %v271, %v259
    %v273 = vadd.f32 %v269, %v272
    %v274 = vmul.f32 %v273, 0.5
    %v275 = vmul.f32 %v273, 0.044715
    %v276 = vmul.f32 %v275, %v273
    %v277 = vmul.f32 %v276, %v273
    %v278 = vadd.f32 %v273, %v277
    %v279 = vmul.f32 %v278, 0.7978846
    %v280 = vtanh.pop %v279
    %v281 = vadd.f32 %v280, 1.0
    %v282 = vmul.f32 %v274, %v281
    %v283 = vadd.f32 %v211, %v282
    %s284 = sld [smem:[#allocation4 + $0xa]]
    %s285 = sld [smem:[#allocation2 + $0x1e]]
    %v286 = vstv %s285
    %v287 = vmul.f32 %v286, %v211
    %v288 = vstv %s284
    %v289 = vadd.f32 %v288, %v287
    %s290 = sld [smem:[#allocation2 + $0x1f]]
    %v291 = vstv %s290
    %v292 = vmul.f32 %v291, %v235
    %v293 = vadd.f32 %v289, %v292
    %s294 = sld [smem:[#allocation2 + $0x20]]
    %v295 = vstv %s294
    %v296 = vmul.f32 %v295, %v259
    %v297 = vadd.f32 %v293, %v296
    %v298 = vmul.f32 %v297, 0.5
    %v299 = vmul.f32 %v297, 0.044715
    %v300 = vmul.f32 %v299, %v297
    %v301 = vmul.f32 %v300, %v297
    %v302 = vadd.f32 %v297, %v301
    %v303 = vmul.f32 %v302, 0.7978846
    %v304 = vtanh.pop %v303
    %v305 = vadd.f32 %v304, 1.0
    %v306 = vmul.f32 %v298, %v305
    %v307 = vadd.f32 %v235, %v306
    %s308 = sld [smem:[#allocation4 + $0xb]]
    %s309 = sld [smem:[#allocation2 + $0x21]]
    %v310 = vstv %s309
    %v311 = vmul.f32 %v310, %v211
    %v312 = vstv %s308
    %v313 = vadd.f32 %v312, %v311
    %s314 = sld [smem:[#allocation2 + $0x22]]
    %v315 = vstv %s314
    %v316 = vmul.f32 %v315, %v235
    %v317 = vadd.f32 %v313, %v316
    %s318 = sld [smem:[#allocation2 + $0x23]]
    %v319 = vstv %s318
    %v320 = vmul.f32 %v319, %v259
    %v321 = vadd.f32 %v317, %v320
    %v322 = vmul.f32 %v321, 0.5
    %v323 = vmul.f32 %v321, 0.044715
    %v324 = vmul.f32 %v323, %v321
    %v325 = vmul.f32 %v324, %v321
    %v326 = vadd.f32 %v321, %v325
    %v327 = vmul.f32 %v326, 0.7978846
    %v328 = vtanh.pop %v327
    %v329 = vadd.f32 %v328, 1.0
    %v330 = vmul.f32 %v322, %v329
    %v331 = vadd.f32 %v259, %v330
    %s332 = sld [smem:[#allocation4 + $0xc]]
    %s333 = sld [smem:[#allocation2 + $0x24]]
    %v334 = vstv %s333
    %v335 = vmul.f32 %v334, %v283
    %v336 = vstv %s332
    %v337 = vadd.f32 %v336, %v335
    %s338 = sld [smem:[#allocation2 + $0x25]]
    %v339 = vstv %s338
    %v340 = vmul.f32 %v339, %v307
    %v341 = vadd.f32 %v337, %v340
    %s342 = sld [smem:[#allocation2 + $0x26]]
    %v343 = vstv %s342
    %v344 = vmul.f32 %v343, %v331
    %v345 = vadd.f32 %v341, %v344
    %v346 = vmul.f32 %v345, 0.5
    %v347 = vmul.f32 %v345, 0.044715
    %v348 = vmul.f32 %v347, %v345
    %v349 = vmul.f32 %v348, %v345
    %v350 = vadd.f32 %v345, %v349
    %v351 = vmul.f32 %v350, 0.7978846
    %v352 = vtanh.pop %v351
    %v353 = vadd.f32 %v352, 1.0
    %v354 = vmul.f32 %v346, %v353
    %355 = vst [vmem:[%s3] sm:$0x1] %v354
    // Predicated region
    $region22: #{forward.1} parent=1 // pred_check
      _
    $region23: #{forward.1} parent=1 // pred_check_branch
      %357 = sbr.rel (0) target = $region25
    $region24: #{forward.1} parent=1 // pred_region
      _
    $region25: #{forward.1} parent=1 // pred_fallthru
      _
    // Predicated region
    $region26: #{forward.1} parent=1 // pred_check
      _
    $region27: #{forward.1} parent=1 // pred_check_branch
      %359 = sbr.rel (0) target = $region29
    $region28: #{forward.1} parent=1 // pred_region
      _
    $region29: #{forward.1} parent=1 // pred_fallthru
      _
    %360 = vsyncpa [#allocation3], 1
    %361 = vsyncpa [#allocation5], 1

</llo_original>
